<compile_context>
chip_gen: v5e
topology: v5e:2x2
jax: 0.10.0
libtpu: 0.0.40
codegen_flags: <defaults>
</compile_context>

<pallas_src>
import functools

import jax
import jax.numpy as jnp
from jax import lax
from jax.experimental import pallas as pl
from jax.experimental.pallas import tpu as pltpu


_NEG_BIG = -3.0e38  # finite stand-in for -inf (avoids inf-inf / 0*inf -> NaN)


def _round_up(x, m):
    return (x + m - 1) // m * m


def _vmem_capacity_bytes():
    try:
        return int(pltpu.get_tpu_info().vmem_capacity_bytes)
    except Exception:
        return 64 * 1024 * 1024       # v7x floor: be conservative if query fails


def _choose_tiles(n, vmem_cap):
    """Pick (tq, tk, n_pad): tq | tk | n_pad, TPU layout rules, cache fits VMEM."""
    n8 = _round_up(n, 8)
    if n8 <= 256:
        # Single k tile.  Split q in two when possible so the "parallel" q axis
        # can be spread over both v7x TensorCores.
        tq = n8 // 2 if (n8 >= 16 and n8 % 16 == 0) else n8
        return tq, n8, n8
    tq = 256
    tk = min(2048, _round_up(n8, 256))
    n_pad = _round_up(n8, tk)
    # Keep the (tq, n_pad) f32 sim cache comfortably inside VMEM.
    cache_budget = int(0.4 * vmem_cap)
    while tq > 32 and tq * n_pad * 4 > cache_budget:
        tq //= 2
    # TODO(synk): fall back to a recompute (cache-less) phase-1 path when even
    # tq=32 overflows the cache budget (n_pad beyond ~100K rows).
    return tq, tk, n_pad


def _supcon_kernel(q_ref, kT_ref, qlab_ref, klab_ref, loss_ref, cnt_ref,
                   m_sc, negsum_sc, possum_sc, pls_sc, sim_sc, poscnt_sc,
                   *, temperature, n_valid, padded):
    tq = q_ref.shape[0]
    tk = kT_ref.shape[1]
    qi = pl.program_id(0)
    phase = pl.program_id(1)
    ki = pl.program_id(2)
    nk = pl.num_programs(2)

    def masks():
        # Rebuild the (tq, tk) same/pos masks from the tiny label vectors.
        same = qlab_ref[...] == klab_ref[...]                       # (tq, tk)
        row_ids = lax.broadcasted_iota(jnp.int32, (tq, 1), 0) + qi * tq
        col_ids = lax.broadcasted_iota(jnp.int32, (1, tk), 1) + ki * tk
        pos = jnp.logical_and(same, row_ids != col_ids)             # diag off
        return same, pos

    @pl.when(jnp.logical_and(phase == 0, ki == 0))
    def _init():
        m_sc[...] = jnp.full_like(m_sc, _NEG_BIG)
        negsum_sc[...] = jnp.zeros_like(negsum_sc)
        possum_sc[...] = jnp.zeros_like(possum_sc)
        pls_sc[...] = jnp.zeros_like(pls_sc)

    # ---- phase 0: matmul -> cache sim tile; online row-max + negative sum.
    @pl.when(phase == 0)
    def _phase0():
        same, pos = masks()
        # (tq,d) @ (d,tk) on the MXU; K is pre-transposed so no relayout.
        sim = jnp.dot(q_ref[...], kT_ref[...],
                      preferred_element_type=jnp.float32)
        # Scale on the f32 result (bf16-safe; don't compound bf16 rounding).
        sim = sim * jnp.float32(1.0 / temperature)
        if padded:
            col_ids = lax.broadcasted_iota(jnp.int32, (1, tk), 1) + ki * tk
            sim = jnp.where(col_ids < n_valid, sim, _NEG_BIG)
        sim_sc[ki] = sim                       # cache for phase 1 (no recompute)

        m_prev = m_sc[...]
        m_new = jnp.maximum(m_prev, jnp.max(sim, axis=1, keepdims=True))
        e = jnp.exp(sim - m_new)
        negsum_sc[...] = (jnp.exp(m_prev - m_new) * negsum_sc[...]
                          + jnp.sum(jnp.where(same, 0.0, e),
                                    axis=1, keepdims=True))
        m_sc[...] = m_new
        # Per-(q-tile, k-tile) "has positives" flag -> phase-1 block skip.
        poscnt_sc[ki] = (jnp.sum(pos.astype(jnp.float32)) > 0.0
                         ).astype(jnp.int32)

    # ---- phase 1: read cached sim, accumulate pos-count and sum(pos*log_prob).
    # Skipped entirely for tiles with no positive pairs.
    @pl.when(jnp.logical_and(phase == 1, poscnt_sc[ki] > 0))
    def _phase1():
        _, pos = masks()
        s = sim_sc[ki] - m_sc[...]
        log_prob = s - jnp.log(negsum_sc[...] + jnp.exp(s))
        possum_sc[...] += jnp.sum(pos.astype(jnp.float32), axis=1, keepdims=True)
        pls_sc[...] += jnp.sum(jnp.where(pos, log_prob, 0.0),
                               axis=1, keepdims=True)

    # ---- finalize this q tile: per-row mean over positives, masked partials.
    @pl.when(jnp.logical_and(phase == 1, ki == nk - 1))
    def _finalize():
        pos_sum = possum_sc[...]                                    # (tq, 1)
        include = pos_sum > 0.0
        mean_lp = pls_sc[...] / jnp.where(include, pos_sum, 1.0)
        total = jnp.sum(jnp.where(include, (-temperature) * mean_lp, 0.0))
        cnt = jnp.sum(include.astype(jnp.float32))
        loss_ref[...] = jnp.full(loss_ref.shape, total, jnp.float32)
        cnt_ref[...] = jnp.full(cnt_ref.shape, cnt, jnp.float32)


def _canonical_labels(same_label_mask):
    """Smallest same-group row index per row.

    Assumes same_label_mask is an equivalence relation (labels==labels), which
    is the module's contract; arbitrary non-transitive masks are out of scope.
    """
    same = jnp.asarray(same_label_mask, dtype=bool)
    n = same.shape[0]
    idx = jnp.arange(n, dtype=jnp.int32)
    first = jnp.argmax(same, axis=1).astype(jnp.int32)
    has_any = jnp.any(same, axis=1)
    return jnp.where(has_any, jnp.minimum(first, idx), idx)


def supcon_loss(embs, same_label_mask, no_label_mask, temperature=0.01,
                tq=None, tk=None, compute_dtype=None):
    """Pallas implementation of SupConLoss.forward. Returns a scalar (f32)."""
    labels = _canonical_labels(same_label_mask)
    return supcon_loss_from_labels(embs, labels, no_label_mask,
                                   temperature=temperature, tq=tq, tk=tk,
                                   compute_dtype=compute_dtype)


def supcon_loss_from_labels(embs, labels, no_label_mask, temperature=0.01,
                            tq=None, tk=None, compute_dtype=None):
    """Same loss, but fed with per-row non-negative integer labels (no N^2 mask)."""
    n, d = embs.shape
    vmem_cap = _vmem_capacity_bytes()

    if tq is None or tk is None:
        tq, tk, n_pad = _choose_tiles(n, vmem_cap)
    else:
        assert tq % 8 == 0 and tk % tq == 0, (tq, tk)
        n_pad = _round_up(n, tk)
        assert tk % 128 == 0 or tk == n_pad, tk
    nq, nk = n_pad // tq, n_pad // tk

    cdtype = jnp.dtype(compute_dtype) if compute_dtype is not None else embs.dtype
    embs_c = embs.astype(cdtype)

    nolab = jnp.asarray(no_label_mask, dtype=bool).reshape(n)
    labels = jnp.asarray(labels, dtype=jnp.int32).reshape(n)
    # q-side labels: fold no-label rows in as sentinel -2 -> no positive pairs
    # -> excluded from the loss (== include_in_loss).  k-side keeps the true
    # labels so every other row's positives/negatives match the reference.
    qlab = jnp.where(nolab, jnp.int32(-2), labels).reshape(n, 1)
    klab = labels.reshape(1, n)

    embs_p, qlab_p, klab_p = embs_c, qlab, klab
    if n_pad != n:
        pad = n_pad - n
        embs_p = jnp.pad(embs_c, ((0, pad), (0, 0)))
        qlab_p = jnp.pad(qlab, ((0, pad), (0, 0)), constant_values=-3)
        klab_p = jnp.pad(klab, ((0, 0), (0, pad)), constant_values=-1)
    kT_p = embs_p.T                       # (d, n_pad): plain matmul, no relayout

    # VMEM limit derived from actual tile/scratch sizes, with headroom below
    # the physical capacity (v7x: 64 MiB -> <= 56 MiB).
    esize = jnp.dtype(cdtype).itemsize
    cache_bytes = nk * tq * tk * 4
    stream_bytes = 2 * ((tq * d + d * tk) * esize + (tq + tk) * 4)
    fixed_bytes = 4 * tq * 4 + 2 * 2 * 8 * 128 * 4
    need = cache_bytes + stream_bytes + fixed_bytes
    vmem_limit = int(min(max(int(need * 1.5) + (4 << 20), 32 << 20),
                         vmem_cap - (8 << 20)))

    kernel = functools.partial(_supcon_kernel, temperature=float(temperature),
                               n_valid=n, padded=(n_pad != n))
    nk_last = nk - 1
    loss_sums, counts = pl.pallas_call(
        kernel,
        out_shape=(jax.ShapeDtypeStruct((nq, 8, 128), jnp.float32),
                   jax.ShapeDtypeStruct((nq, 8, 128), jnp.float32)),
        grid_spec=pltpu.PrefetchScalarGridSpec(
            num_scalar_prefetch=0,
            grid=(nq, 2, nk),
            in_specs=[
                pl.BlockSpec((tq, d), lambda q, p, k: (q, 0)),      # query rows
                # K is only consumed in phase 0; pin its block index during
                # phase 1 so the pipeline does not re-DMA it.
                pl.BlockSpec((d, tk),
                             lambda q, p, k: (0, k + p * (nk_last - k))),
                pl.BlockSpec((tq, 1), lambda q, p, k: (q, 0)),      # q labels
                pl.BlockSpec((1, tk), lambda q, p, k: (0, k)),      # k labels
            ],
            out_specs=(
                pl.BlockSpec((1, 8, 128), lambda q, p, k: (q, 0, 0)),
                pl.BlockSpec((1, 8, 128), lambda q, p, k: (q, 0, 0)),
            ),
            scratch_shapes=[
                pltpu.VMEM((tq, 1), jnp.float32),       # running row max
                pltpu.VMEM((tq, 1), jnp.float32),       # running neg sum
                pltpu.VMEM((tq, 1), jnp.float32),       # positive count
                pltpu.VMEM((tq, 1), jnp.float32),       # sum(pos * log_prob)
                pltpu.VMEM((nk, tq, tk), jnp.float32),  # sim row-block cache
                pltpu.SMEM((nk,), jnp.int32),           # phase-1 skip flags
            ],
        ),
        compiler_params=pltpu.CompilerParams(
            dimension_semantics=("parallel", "arbitrary", "arbitrary"),
            vmem_limit_bytes=vmem_limit,
        ),
    )(embs_p, kT_p, qlab_p, klab_p)

    total = jnp.sum(loss_sums[:, 0, 0])
    cnt = jnp.sum(counts[:, 0, 0])
    return jnp.where(cnt > 0.0, total / jnp.maximum(cnt, 1.0), jnp.float32(0.0))


def _supcon_loss_ref(embs, same_label_mask, no_label_mask, temperature=0.01):
    """Pure-JAX reference mirroring the PyTorch forward (for validation)."""
    same = same_label_mask.astype(jnp.float32)
    no_label = no_label_mask.astype(bool).reshape(-1)
    sim = embs.astype(jnp.float32) @ embs.astype(jnp.float32).T / temperature
    sim = sim - jnp.max(sim, axis=1, keepdims=True)
    negs = jnp.exp(sim) * (1.0 - same)
    denom = negs.sum(axis=1, keepdims=True) + jnp.exp(sim)
    log_prob = sim - jnp.log(denom)
    n = embs.shape[0]
    pos = same * (1.0 - jnp.eye(n, dtype=jnp.float32))
    pos_sum = pos.sum(1)
    include = (pos_sum != 0) & (~no_label)
    mlpp = (pos * log_prob).sum(1) / (pos_sum + (~include).astype(jnp.float32))
    cnt = include.sum()
    total = jnp.sum(jnp.where(include, -temperature * mlpp, 0.0))
    return jnp.where(cnt > 0, total / jnp.maximum(cnt, 1), 0.0)


if __name__ == "__main__":
    key = jax.random.PRNGKey(0)
    k1, k2, k3, k4 = jax.random.split(key, 4)

    # --- Test 1: tiny single-tile path (N=8, D=32), f32, tight tolerance.
    N, D = 8, 32
    embs = 0.05 * jax.random.normal(k1, (N, D), dtype=jnp.float32)
    labels = jnp.array([0, 0, 1, 1, 2, 3, 3, 3], dtype=jnp.int32)
    same_label_mask = labels[:, None] == labels[None, :]
    no_label_mask = jnp.array([0, 0, 0, 0, 1, 0, 0, 1], dtype=bool)

    loss = jax.block_until_ready(
        supcon_loss(embs, same_label_mask, no_label_mask, temperature=0.01))
    ref = _supcon_loss_ref(embs, same_label_mask, no_label_mask, temperature=0.01)
    assert jnp.isfinite(ref), ref
    assert jnp.allclose(loss, ref, rtol=1e-3, atol=1e-5), (loss, ref)

    # --- Test 2: multi-tile flash path with padding (N=300 -> 384, tq=tk=128 ->
    # grid (3, 2, 3)); exercises online max, sim cache, padded rows/cols,
    # per-tile diagonal masking and the phase-1 skip flags.  f32, tight tol.
    N2, D2 = 300, 64
    embs2 = 0.05 * jax.random.normal(k2, (N2, D2), dtype=jnp.float32)
    labels2 = jax.random.randint(k3, (N2,), 0, 7)
    same2 = labels2[:, None] == labels2[None, :]
    nolab2 = jax.random.bernoulli(k4, 0.1, (N2,))

    ref2 = _supcon_loss_ref(embs2, same2, nolab2, temperature=0.01)
    assert jnp.isfinite(ref2), ref2
    loss2 = jax.block_until_ready(
        supcon_loss(embs2, same2, nolab2, temperature=0.01, tq=128, tk=128))
    assert jnp.allclose(loss2, ref2, rtol=1e-3, atol=1e-5), (loss2, ref2)

    # --- Test 3: auto tiles (tq=256, tk=512 -> grid (2, 2, 1)) with bf16
    # compute (full-rate MXU / half HBM); looser tolerance for bf16 rounding.
    loss3 = jax.block_until_ready(
        supcon_loss(embs2, same2, nolab2, temperature=0.01,
                    compute_dtype=jnp.bfloat16))
    assert jnp.isfinite(loss3), loss3
    assert jnp.allclose(loss3, ref2, rtol=2e-2, atol=1e-3), (loss3, ref2)

    print("KERNEL_OK")
</pallas_src>

<mosaic_0001>
module attributes {stable_mosaic.version = 11 : i64} {
  func.func @_supcon_kernel(%arg0: i32, %arg1: i32, %arg2: i32, %arg3: memref<8x32xf32, #tpu.memory_space<vmem>>, %arg4: memref<32x8xf32, #tpu.memory_space<vmem>>, %arg5: memref<8x1xi32, #tpu.memory_space<vmem>>, %arg6: memref<1x8xi32, #tpu.memory_space<vmem>>, %arg7: memref<1x8x128xf32, #tpu.memory_space<vmem>>, %arg8: memref<1x8x128xf32, #tpu.memory_space<vmem>>, %arg9: memref<8x1xf32, #tpu.memory_space<vmem>>, %arg10: memref<8x1xf32, #tpu.memory_space<vmem>>, %arg11: memref<8x1xf32, #tpu.memory_space<vmem>>, %arg12: memref<8x1xf32, #tpu.memory_space<vmem>>, %arg13: memref<1x8x8xf32, #tpu.memory_space<vmem>>, %arg14: memref<1xi32, #tpu.memory_space<smem>>) attributes {dimension_semantics = [#tpu.dimension_semantics<parallel>, #tpu.dimension_semantics<arbitrary>, #tpu.dimension_semantics<arbitrary>], iteration_bounds = array<i64: 1, 2, 1>, scalar_prefetch = 0 : i64, scratch_operands = 6 : i64, tpu.core_type = #tpu.core_type<tc>, window_params = [{transform_indices = @transform_0, window_bounds = array<i64: 8, 32>}, {transform_indices = @transform_1, window_bounds = array<i64: 32, 8>}, {transform_indices = @transform_2, window_bounds = array<i64: 8, 1>}, {transform_indices = @transform_3, window_bounds = array<i64: 1, 8>}, {transform_indices = @transform_4, window_bounds = array<i64: 1, 8, 128>}, {transform_indices = @transform_5, window_bounds = array<i64: 1, 8, 128>}]} {
    %c0_i32 = arith.constant 0 : i32
    %0 = arith.cmpi eq, %arg1, %c0_i32 : i32
    %c0_i32_0 = arith.constant 0 : i32
    %1 = arith.cmpi eq, %arg2, %c0_i32_0 : i32
    %2 = arith.andi %0, %1 : i1
    %3 = arith.extui %2 : i1 to i32
    %c0_i32_1 = arith.constant 0 : i32
    %4 = arith.cmpi ne, %3, %c0_i32_1 : i32
    scf.if %4 {
      %cst = arith.constant -3.000000e+38 : f32
      %20 = vector.broadcast %cst : f32 to vector<8x1xf32>
      %c0 = arith.constant 0 : index
      %c0_9 = arith.constant 0 : index
      %21 = vector.load %arg9[%c0, %c0_9] : memref<8x1xf32, #tpu.memory_space<vmem>>, vector<8x1xf32>
      tpu.vector_store %arg9[%c0, %c0_9], %20 {strides = array<i32>} : memref<8x1xf32, #tpu.memory_space<vmem>>, vector<8x1xf32>,
      %cst_10 = arith.constant 0.000000e+00 : f32
      %22 = vector.broadcast %cst_10 : f32 to vector<8x1xf32>
      %c0_11 = arith.constant 0 : index
      %c0_12 = arith.constant 0 : index
      %23 = vector.load %arg10[%c0_11, %c0_12] : memref<8x1xf32, #tpu.memory_space<vmem>>, vector<8x1xf32>
      tpu.vector_store %arg10[%c0_11, %c0_12], %22 {strides = array<i32>} : memref<8x1xf32, #tpu.memory_space<vmem>>, vector<8x1xf32>,
      %cst_13 = arith.constant 0.000000e+00 : f32
      %24 = vector.broadcast %cst_13 : f32 to vector<8x1xf32>
      %c0_14 = arith.constant 0 : index
      %c0_15 = arith.constant 0 : index
      %25 = vector.load %arg11[%c0_14, %c0_15] : memref<8x1xf32, #tpu.memory_space<vmem>>, vector<8x1xf32>
      tpu.vector_store %arg11[%c0_14, %c0_15], %24 {strides = array<i32>} : memref<8x1xf32, #tpu.memory_space<vmem>>, vector<8x1xf32>,
      %cst_16 = arith.constant 0.000000e+00 : f32
      %26 = vector.broadcast %cst_16 : f32 to vector<8x1xf32>
      %c0_17 = arith.constant 0 : index
      %c0_18 = arith.constant 0 : index
      %27 = vector.load %arg12[%c0_17, %c0_18] : memref<8x1xf32, #tpu.memory_space<vmem>>, vector<8x1xf32>
      tpu.vector_store %arg12[%c0_17, %c0_18], %26 {strides = array<i32>} : memref<8x1xf32, #tpu.memory_space<vmem>>, vector<8x1xf32>,
    } else {
    }
    %c0_i32_2 = arith.constant 0 : i32
    %5 = arith.cmpi eq, %arg1, %c0_i32_2 : i32
    %6 = arith.extui %5 : i1 to i32
    %c0_i32_3 = arith.constant 0 : i32
    %7 = arith.cmpi ne, %6, %c0_i32_3 : i32
    scf.if %7 {
      %c0 = arith.constant 0 : index
      %c0_9 = arith.constant 0 : index
      %20 = vector.load %arg5[%c0, %c0_9] : memref<8x1xi32, #tpu.memory_space<vmem>>, vector<8x1xi32>
      %c0_10 = arith.constant 0 : index
      %c0_11 = arith.constant 0 : index
      %21 = vector.load %arg6[%c0_10, %c0_11] : memref<1x8xi32, #tpu.memory_space<vmem>>, vector<1x8xi32>
      %22 = vector.broadcast %20 : vector<8x1xi32> to vector<8x8xi32>
      %23 = vector.broadcast %21 : vector<1x8xi32> to vector<8x8xi32>
      %24 = arith.cmpi eq, %22, %23 : vector<8x8xi32>
      %25 = tpu.iota {dimensions = array<i32: 0>} : vector<8x1xi32>
      %c8_i32 = arith.constant 8 : i32
      %26 = arith.muli %arg0, %c8_i32 : i32
      %27 = vector.broadcast %26 : i32 to vector<8x1xi32>
      %28 = arith.addi %25, %27 : vector<8x1xi32>
      %29 = tpu.iota {dimensions = array<i32: 1>} : vector<1x8xi32>
      %c8_i32_12 = arith.constant 8 : i32
      %30 = arith.muli %arg2, %c8_i32_12 : i32
      %31 = vector.broadcast %30 : i32 to vector<1x8xi32>
      %32 = arith.addi %29, %31 : vector<1x8xi32>
      %33 = vector.broadcast %28 : vector<8x1xi32> to vector<8x8xi32>
      %34 = vector.broadcast %32 : vector<1x8xi32> to vector<8x8xi32>
      %35 = arith.cmpi ne, %33, %34 : vector<8x8xi32>
      %36 = arith.andi %24, %35 : vector<8x8xi1>
      %c0_13 = arith.constant 0 : index
      %c0_14 = arith.constant 0 : index
      %37 = vector.load %arg3[%c0_13, %c0_14] : memref<8x32xf32, #tpu.memory_space<vmem>>, vector<8x32xf32>
      %c0_15 = arith.constant 0 : index
      %c0_16 = arith.constant 0 : index
      %38 = vector.load %arg4[%c0_15, %c0_16] : memref<32x8xf32, #tpu.memory_space<vmem>>, vector<32x8xf32>
      %cst = arith.constant dense<0.000000e+00> : vector<8x8xf32>
      %39 = tpu.matmul %37, %38, %cst {dimension_numbers = #tpu.dot_dimension_numbers<[1], [0], [0], [1], [0, 0, 1, 1], [], []>} : vector<8x32xf32>, vector<32x8xf32>, vector<8x8xf32> -> vector<8x8xf32>
      %cst_17 = arith.constant 1.000000e+02 : f32
      %40 = vector.broadcast %cst_17 : f32 to vector<8x8xf32>
      %41 = arith.mulf %39, %40 : vector<8x8xf32>
      %42 = arith.index_cast %arg2 : i32 to index
      %c0_18 = arith.constant 0 : index
      %c0_19 = arith.constant 0 : index
      %43 = vector.load %arg13[%42, %c0_18, %c0_19] : memref<1x8x8xf32, #tpu.memory_space<vmem>>, vector<1x8x8xf32>
      %44 = vector.shape_cast %43 : vector<1x8x8xf32> to vector<8x8xf32>
      %45 = vector.shape_cast %41 : vector<8x8xf32> to vector<1x8x8xf32>
      tpu.vector_store %arg13[%42, %c0_18, %c0_19], %45 {strides = array<i32>} : memref<1x8x8xf32, #tpu.memory_space<vmem>>, vector<1x8x8xf32>,
      %c0_20 = arith.constant 0 : index
      %c0_21 = arith.constant 0 : index
      %46 = vector.load %arg9[%c0_20, %c0_21] : memref<8x1xf32, #tpu.memory_space<vmem>>, vector<8x1xf32>
      %cst_22 = arith.constant dense<0xFF800000> : vector<8xf32>
      %47 = vector.multi_reduction <maximumf>, %41, %cst_22 [1] : vector<8x8xf32> to vector<8xf32>
      %48 = vector.shape_cast %47 : vector<8xf32> to vector<8x1xf32>
      %49 = arith.maximumf %46, %48 : vector<8x1xf32>
      %50 = vector.broadcast %49 : vector<8x1xf32> to vector<8x8xf32>
      %51 = arith.subf %41, %50 : vector<8x8xf32>
      %52 = math.exp %51 : vector<8x8xf32>
      %53 = arith.subf %46, %49 : vector<8x1xf32>
      %54 = math.exp %53 : vector<8x1xf32>
      %c0_23 = arith.constant 0 : index
      %c0_24 = arith.constant 0 : index
      %55 = vector.load %arg10[%c0_23, %c0_24] : memref<8x1xf32, #tpu.memory_space<vmem>>, vector<8x1xf32>
      %56 = arith.mulf %54, %55 : vector<8x1xf32>
      %cst_25 = arith.constant 0.000000e+00 : f32
      %57 = vector.broadcast %cst_25 : f32 to vector<8x8xf32>
      %58 = arith.select %24, %57, %52 : vector<8x8xi1>, vector<8x8xf32>
      %cst_26 = arith.constant dense<0.000000e+00> : vector<8xf32>
      %59 = vector.multi_reduction <add>, %58, %cst_26 [1] : vector<8x8xf32> to vector<8xf32>
      %60 = vector.shape_cast %59 : vector<8xf32> to vector<8x1xf32>
      %61 = arith.addf %56, %60 : vector<8x1xf32>
      %c0_27 = arith.constant 0 : index
      %c0_28 = arith.constant 0 : index
      %62 = vector.load %arg10[%c0_27, %c0_28] : memref<8x1xf32, #tpu.memory_space<vmem>>, vector<8x1xf32>
      tpu.vector_store %arg10[%c0_27, %c0_28], %61 {strides = array<i32>} : memref<8x1xf32, #tpu.memory_space<vmem>>, vector<8x1xf32>,
      %c0_29 = arith.constant 0 : index
      %c0_30 = arith.constant 0 : index
      %63 = vector.load %arg9[%c0_29, %c0_30] : memref<8x1xf32, #tpu.memory_space<vmem>>, vector<8x1xf32>
      tpu.vector_store %arg9[%c0_29, %c0_30], %49 {strides = array<i32>} : memref<8x1xf32, #tpu.memory_space<vmem>>, vector<8x1xf32>,
      %64 = arith.extui %36 : vector<8x8xi1> to vector<8x8xi32>
      %65 = arith.sitofp %64 : vector<8x8xi32> to vector<8x8xf32>
      %66 = vector.shape_cast %65 : vector<8x8xf32> to vector<1x8x8xf32>
      %cst_31 = arith.constant dense<0.000000e+00> : vector<1xf32>
      %67 = vector.multi_reduction <add>, %66, %cst_31 [1, 2] : vector<1x8x8xf32> to vector<1xf32>
      %68 = vector.shape_cast %67 : vector<1xf32> to vector<1x1x1xf32>
      %69 = vector.extract %68[0, 0, 0] : f32 from vector<1x1x1xf32>
      %cst_32 = arith.constant 0.000000e+00 : f32
      %70 = arith.cmpf ogt, %69, %cst_32 : f32
      %71 = arith.extui %70 : i1 to i32
      %72 = arith.index_cast %arg2 : i32 to index
      %73 = memref.load %arg14[%72] : memref<1xi32, #tpu.memory_space<smem>>
      memref.store %71, %arg14[%72] : memref<1xi32, #tpu.memory_space<smem>>
    } else {
    }
    %c1_i32 = arith.constant 1 : i32
    %8 = arith.cmpi eq, %arg1, %c1_i32 : i32
    %9 = arith.index_cast %arg2 : i32 to index
    %10 = memref.load %arg14[%9] : memref<1xi32, #tpu.memory_space<smem>>
    %c0_i32_4 = arith.constant 0 : i32
    %11 = arith.cmpi sgt, %10, %c0_i32_4 : i32
    %12 = arith.andi %8, %11 : i1
    %13 = arith.extui %12 : i1 to i32
    %c0_i32_5 = arith.constant 0 : i32
    %14 = arith.cmpi ne, %13, %c0_i32_5 : i32
    scf.if %14 {
      %c0 = arith.constant 0 : index
      %c0_9 = arith.constant 0 : index
      %20 = vector.load %arg5[%c0, %c0_9] : memref<8x1xi32, #tpu.memory_space<vmem>>, vector<8x1xi32>
      %c0_10 = arith.constant 0 : index
      %c0_11 = arith.constant 0 : index
      %21 = vector.load %arg6[%c0_10, %c0_11] : memref<1x8xi32, #tpu.memory_space<vmem>>, vector<1x8xi32>
      %22 = vector.broadcast %20 : vector<8x1xi32> to vector<8x8xi32>
      %23 = vector.broadcast %21 : vector<1x8xi32> to vector<8x8xi32>
      %24 = arith.cmpi eq, %22, %23 : vector<8x8xi32>
      %25 = tpu.iota {dimensions = array<i32: 0>} : vector<8x1xi32>
      %c8_i32 = arith.constant 8 : i32
      %26 = arith.muli %arg0, %c8_i32 : i32
      %27 = vector.broadcast %26 : i32 to vector<8x1xi32>
      %28 = arith.addi %25, %27 : vector<8x1xi32>
      %29 = tpu.iota {dimensions = array<i32: 1>} : vector<1x8xi32>
      %c8_i32_12 = arith.constant 8 : i32
      %30 = arith.muli %arg2, %c8_i32_12 : i32
      %31 = vector.broadcast %30 : i32 to vector<1x8xi32>
      %32 = arith.addi %29, %31 : vector<1x8xi32>
      %33 = vector.broadcast %28 : vector<8x1xi32> to vector<8x8xi32>
      %34 = vector.broadcast %32 : vector<1x8xi32> to vector<8x8xi32>
      %35 = arith.cmpi ne, %33, %34 : vector<8x8xi32>
      %36 = arith.andi %24, %35 : vector<8x8xi1>
      %37 = arith.index_cast %arg2 : i32 to index
      %c0_13 = arith.constant 0 : index
      %c0_14 = arith.constant 0 : index
      %38 = vector.load %arg13[%37, %c0_13, %c0_14] : memref<1x8x8xf32, #tpu.memory_space<vmem>>, vector<1x8x8xf32>
      %39 = vector.shape_cast %38 : vector<1x8x8xf32> to vector<8x8xf32>
      %c0_15 = arith.constant 0 : index
      %c0_16 = arith.constant 0 : index
      %40 = vector.load %arg9[%c0_15, %c0_16] : memref<8x1xf32, #tpu.memory_space<vmem>>, vector<8x1xf32>
      %41 = vector.broadcast %40 : vector<8x1xf32> to vector<8x8xf32>
      %42 = arith.subf %39, %41 : vector<8x8xf32>
      %c0_17 = arith.constant 0 : index
      %c0_18 = arith.constant 0 : index
      %43 = vector.load %arg10[%c0_17, %c0_18] : memref<8x1xf32, #tpu.memory_space<vmem>>, vector<8x1xf32>
      %44 = math.exp %42 : vector<8x8xf32>
      %45 = vector.broadcast %43 : vector<8x1xf32> to vector<8x8xf32>
      %46 = arith.addf %45, %44 : vector<8x8xf32>
      %47 = math.log %46 : vector<8x8xf32>
      %48 = arith.subf %42, %47 : vector<8x8xf32>
      %c0_19 = arith.constant 0 : index
      %c0_20 = arith.constant 0 : index
      %49 = vector.load %arg11[%c0_19, %c0_20] : memref<8x1xf32, #tpu.memory_space<vmem>>, vector<8x1xf32>
      %50 = arith.extui %36 : vector<8x8xi1> to vector<8x8xi32>
      %51 = arith.sitofp %50 : vector<8x8xi32> to vector<8x8xf32>
      %cst = arith.constant dense<0.000000e+00> : vector<8xf32>
      %52 = vector.multi_reduction <add>, %51, %cst [1] : vector<8x8xf32> to vector<8xf32>
      %53 = vector.shape_cast %52 : vector<8xf32> to vector<8x1xf32>
      %54 = arith.addf %49, %53 : vector<8x1xf32>
      %c0_21 = arith.constant 0 : index
      %c0_22 = arith.constant 0 : index
      %55 = vector.load %arg11[%c0_21, %c0_22] : memref<8x1xf32, #tpu.memory_space<vmem>>, vector<8x1xf32>
      tpu.vector_store %arg11[%c0_21, %c0_22], %54 {strides = array<i32>} : memref<8x1xf32, #tpu.memory_space<vmem>>, vector<8x1xf32>,
      %c0_23 = arith.constant 0 : index
      %c0_24 = arith.constant 0 : index
      %56 = vector.load %arg12[%c0_23, %c0_24] : memref<8x1xf32, #tpu.memory_space<vmem>>, vector<8x1xf32>
      %cst_25 = arith.constant 0.000000e+00 : f32
      %57 = vector.broadcast %cst_25 : f32 to vector<8x8xf32>
      %58 = arith.select %36, %48, %57 : vector<8x8xi1>, vector<8x8xf32>
      %cst_26 = arith.constant dense<0.000000e+00> : vector<8xf32>
      %59 = vector.multi_reduction <add>, %58, %cst_26 [1] : vector<8x8xf32> to vector<8xf32>
      %60 = vector.shape_cast %59 : vector<8xf32> to vector<8x1xf32>
      %61 = arith.addf %56, %60 : vector<8x1xf32>
      %c0_27 = arith.constant 0 : index
      %c0_28 = arith.constant 0 : index
      %62 = vector.load %arg12[%c0_27, %c0_28] : memref<8x1xf32, #tpu.memory_space<vmem>>, vector<8x1xf32>
      tpu.vector_store %arg12[%c0_27, %c0_28], %61 {strides = array<i32>} : memref<8x1xf32, #tpu.memory_space<vmem>>, vector<8x1xf32>,
    } else {
    }
    %c1_i32_6 = arith.constant 1 : i32
    %15 = arith.cmpi eq, %arg1, %c1_i32_6 : i32
    %c0_i32_7 = arith.constant 0 : i32
    %16 = arith.cmpi eq, %arg2, %c0_i32_7 : i32
    %17 = arith.andi %15, %16 : i1
    %18 = arith.extui %17 : i1 to i32
    %c0_i32_8 = arith.constant 0 : i32
    %19 = arith.cmpi ne, %18, %c0_i32_8 : i32
    scf.if %19 {
      %c0 = arith.constant 0 : index
      %c0_9 = arith.constant 0 : index
      %20 = vector.load %arg11[%c0, %c0_9] : memref<8x1xf32, #tpu.memory_space<vmem>>, vector<8x1xf32>
      %cst = arith.constant 0.000000e+00 : f32
      %21 = vector.broadcast %cst : f32 to vector<8x1xf32>
      %22 = arith.cmpf ogt, %20, %21 : vector<8x1xf32>
      %c0_10 = arith.constant 0 : index
      %c0_11 = arith.constant 0 : index
      %23 = vector.load %arg12[%c0_10, %c0_11] : memref<8x1xf32, #tpu.memory_space<vmem>>, vector<8x1xf32>
      %cst_12 = arith.constant 1.000000e+00 : f32
      %24 = vector.broadcast %cst_12 : f32 to vector<8x1xf32>
      %25 = arith.select %22, %20, %24 : vector<8x1xi1>, vector<8x1xf32>
      %26 = arith.divf %23, %25 : vector<8x1xf32>
      %cst_13 = arith.constant -0.00999999977 : f32
      %27 = vector.broadcast %cst_13 : f32 to vector<8x1xf32>
      %28 = arith.mulf %27, %26 : vector<8x1xf32>
      %cst_14 = arith.constant 0.000000e+00 : f32
      %29 = vector.broadcast %cst_14 : f32 to vector<8x1xf32>
      %30 = arith.select %22, %28, %29 : vector<8x1xi1>, vector<8x1xf32>
      %31 = vector.shape_cast %30 : vector<8x1xf32> to vector<1x8x1xf32>
      %cst_15 = arith.constant dense<0.000000e+00> : vector<1xf32>
      %32 = vector.multi_reduction <add>, %31, %cst_15 [1, 2] : vector<1x8x1xf32> to vector<1xf32>
      %33 = vector.shape_cast %32 : vector<1xf32> to vector<1x1x1xf32>
      %34 = vector.extract %33[0, 0, 0] : f32 from vector<1x1x1xf32>
      %35 = arith.extui %22 : vector<8x1xi1> to vector<8x1xi32>
      %36 = arith.sitofp %35 : vector<8x1xi32> to vector<8x1xf32>
      %37 = vector.shape_cast %36 : vector<8x1xf32> to vector<1x8x1xf32>
      %cst_16 = arith.constant dense<0.000000e+00> : vector<1xf32>
      %38 = vector.multi_reduction <add>, %37, %cst_16 [1, 2] : vector<1x8x1xf32> to vector<1xf32>
      %39 = vector.shape_cast %38 : vector<1xf32> to vector<1x1x1xf32>
      %40 = vector.extract %39[0, 0, 0] : f32 from vector<1x1x1xf32>
      %41 = vector.broadcast %34 : f32 to vector<1x8x128xf32>
      %c0_17 = arith.constant 0 : index
      %c0_18 = arith.constant 0 : index
      %c0_19 = arith.constant 0 : index
      %42 = vector.load %arg7[%c0_17, %c0_18, %c0_19] : memref<1x8x128xf32, #tpu.memory_space<vmem>>, vector<1x8x128xf32>
      tpu.vector_store %arg7[%c0_17, %c0_18, %c0_19], %41 {strides = array<i32>} : memref<1x8x128xf32, #tpu.memory_space<vmem>>, vector<1x8x128xf32>,
      %43 = vector.broadcast %40 : f32 to vector<1x8x128xf32>
      %c0_20 = arith.constant 0 : index
      %c0_21 = arith.constant 0 : index
      %c0_22 = arith.constant 0 : index
      %44 = vector.load %arg8[%c0_20, %c0_21, %c0_22] : memref<1x8x128xf32, #tpu.memory_space<vmem>>, vector<1x8x128xf32>
      tpu.vector_store %arg8[%c0_20, %c0_21, %c0_22], %43 {strides = array<i32>} : memref<1x8x128xf32, #tpu.memory_space<vmem>>, vector<1x8x128xf32>,
    } else {
    }
    return
  }
  func.func @transform_0(%arg0: i32, %arg1: i32, %arg2: i32) -> (i32, i32) {
    %c0_i32 = arith.constant 0 : i32
    %c0_i32_0 = arith.constant 0 : i32
    return %arg0, %c0_i32 : i32, i32
  }
  func.func @transform_1(%arg0: i32, %arg1: i32, %arg2: i32) -> (i32, i32) {
    %c0_i32 = arith.constant 0 : i32
    %0 = arith.subi %c0_i32, %arg2 : i32
    %1 = arith.muli %arg1, %0 : i32
    %2 = arith.addi %arg2, %1 : i32
    %c0_i32_0 = arith.constant 0 : i32
    %c0_i32_1 = arith.constant 0 : i32
    return %c0_i32_0, %2 : i32, i32
  }
  func.func @transform_2(%arg0: i32, %arg1: i32, %arg2: i32) -> (i32, i32) {
    %c0_i32 = arith.constant 0 : i32
    %c0_i32_0 = arith.constant 0 : i32
    return %arg0, %c0_i32 : i32, i32
  }
  func.func @transform_3(%arg0: i32, %arg1: i32, %arg2: i32) -> (i32, i32) {
    %c0_i32 = arith.constant 0 : i32
    %c0_i32_0 = arith.constant 0 : i32
    return %c0_i32, %arg2 : i32, i32
  }
  func.func @transform_4(%arg0: i32, %arg1: i32, %arg2: i32) -> (i32, i32, i32) {
    %c0_i32 = arith.constant 0 : i32
    %c0_i32_0 = arith.constant 0 : i32
    %c0_i32_1 = arith.constant 0 : i32
    return %arg0, %c0_i32, %c0_i32_0 : i32, i32, i32
  }
  func.func @transform_5(%arg0: i32, %arg1: i32, %arg2: i32) -> (i32, i32, i32) {
    %c0_i32 = arith.constant 0 : i32
    %c0_i32_0 = arith.constant 0 : i32
    %c0_i32_1 = arith.constant 0 : i32
    return %arg0, %c0_i32, %c0_i32_0 : i32, i32, i32
  }
}

</mosaic_0001>

<llo_original>
// kernel: tpu_custom_call.1
$region0: #{tpu_custom_call.1}
  #allocation0 [shape = 'u32[]', space=smem, size = 0x4, offset = 0x4, fixed_abs, tag = 'smem constant byte address 0x4 - core index']
  #allocation1 [shape = 'u32[72,128]{1,0:T(1,128)}', space=vmem, size = 0x9000, scoped, tag = 'internal scratch']
  #allocation2 [shape = 'f32[8,1]{1,0:T(8,128)}', space=vmem, size = 0x1000, scoped, tag = 'scratch operand']
  #allocation3 [shape = 'f32[8,1]{1,0:T(8,128)}', space=vmem, size = 0x1000, scoped, tag = 'scratch operand']
  #allocation4 [shape = 'f32[8,1]{1,0:T(8,128)}', space=vmem, size = 0x1000, scoped, tag = 'scratch operand']
  #allocation5 [shape = 'f32[8,1]{1,0:T(8,128)}', space=vmem, size = 0x1000, scoped, tag = 'scratch operand']
  #allocation6 [shape = 'f32[1,8,8]{2,1,0:T(8,128)}', space=vmem, size = 0x1000, scoped, tag = 'scratch operand']
  #allocation7 [shape = 's32[1]{0:T(128)}', space=smem, size = 0x200, scoped, tag = 'scratch operand']
  %s0 = inlined_call_operand.vmem [shape: f32[8,32], index: 0, kind: input, shape index: {}]
  %s1 = inlined_call_operand.vmem [shape: f32[32,8], index: 1, kind: input, shape index: {}]
  %s2 = inlined_call_operand.vmem [shape: s32[8,1], index: 2, kind: input, shape index: {}]
  %s3 = inlined_call_operand.vmem [shape: s32[1,8], index: 3, kind: input, shape index: {}]
  %s4 = inlined_call_operand.hbm [shape: f32[1,8,128], index: 4, kind: output, shape index: {0}]
  %s5 = inlined_call_operand.hbm [shape: f32[1,8,128], index: 5, kind: output, shape index: {1}]
  %6 = xla_tuple %s4, %s5
  %s7 = sld [smem:[#allocation0]]
  $region73: #{tpu_custom_call.1} parent=0
    _
  %s9 = ssub.s32 1, %s7
  %s10 = scalar_select 0, %s9, %s7
  $region1: #{tpu_custom_call.1} parent=0
    #allocation8 [shape = 'u8[4096]{0}', space=vmem, size = 0x1000, scoped, tag = 'output window, operand 0, single buffered']
    #allocation9 [shape = 's32[2]{0}', space=sflag, size = 0x8, scoped, tag = 'scoped memory for tpu_custom_call.1']
    #allocation10 [shape = 'u8[4096]{0}', space=vmem, size = 0x1000, scoped, tag = 'output window, operand 1, single buffered']
    #allocation11 [shape = 's32[1]{0}', space=sflag, size = 0x4, scoped, tag = 'scoped memory for tpu_custom_call.1']
    %11 = vsyncpa [#allocation9], 0
    %12 = vsyncpa [#allocation11], 0
    loop: start=0, step=1, limit=4
    $region2: #{tpu_custom_call.1} parent=1 // loop_pre_header
      _
    $region3: #{tpu_custom_call.1} parent=1 // loop_header
      %s14 = sphi 0, %s18
      %p15 = scmp.ge.s32.totalorder %s14, 4
      %s21 = sphi 0, %s40
      %s22 = sphi 0, %s36
      %s23 = sphi 0, %s32
      %s24 = sphi 0, %s21
      %s25 = sphi 0, %s22
      %s26 = sphi 0, %s23
      %s27 = sphi 0, %s24
      %s28 = sphi 0, %s25
      %s29 = sphi 0, %s26
      %s43 = sphi 0, %s45
      %s46 = sphi 0, %s43
      %s47 = sphi 0, %s46
      %s63 = sphi 0, %s47
      %s75 = sphi 0, %s77
      %s78 = sphi 0, %s75
      %s79 = sphi 0, %s78
      %s95 = sphi 0, %s79
      %s101 = sphi 0, %s103
      %s104 = sphi 0, %s101
      %s105 = sphi 0, %s104
      %s121 = sphi 0, %s105
      %s127 = sphi 0, %s129
      %s130 = sphi 0, %s127
      %s131 = sphi 0, %s130
      %s147 = sphi 0, %s131
      %s153 = sphi 0, %s155
      %s156 = sphi 0, %s153
      %s157 = sphi 0, %s156
      %s173 = sphi 0, %s157
      %s179 = sphi 0, %s181
      %s182 = sphi 0, %s179
      %s183 = sphi 0, %s182
      %s199 = sphi 0, %s183
    $region4: #{tpu_custom_call.1} parent=1 // loop_header_branch
      %17 = sbr.rel (%p15) target = $region8
    $region5: #{tpu_custom_call.1} parent=1 // loop_body
      %s19 = ssub.s32 %s14, 1
      %s20 = ssub.s32 %s14, 2
      %s30 = sadd.s32 1, %s23
      %p31 = scmp.ge.s32.totalorder %s30, 1
      %s32 = scalar_select %p31, 0, %s30
      %s33 = sadd.s32 1, %s22
      %s34 = scalar_select %p31, %s33, %s22
      %p35 = scmp.ge.s32.totalorder %s34, 2
      %s36 = scalar_select %p35, 0, %s34
      %s37 = sadd.s32 1, %s21
      %s38 = scalar_select %p35, %s37, %s21
      %p39 = scmp.ge.s32.totalorder %s38, 1
      %s40 = scalar_select %p39, 0, %s38
      %s41 = ssub.s32 %s21, %s40
      %p42 = scmp.eq.s32.totalorder %s41, 0
      %s44 = sadd.s32 %s43, 1
      %s45 = scalar_select %p42, %s43, %s44
      %p48 = pneg %p42
      %p49 = scmp.eq.s32.totalorder %s14, 1
      %p50 = por %p48, %p49
      %p51 = scmp.ne.s32.totalorder %s43, %s46
      %p52 = scmp.eq.s32.totalorder %s14, 0
      %p53 = por %p51, %p52
      %p54 = scmp.ne.s32.totalorder %s43, %s46
      %p55 = scmp.eq.s32.totalorder %s19, 1
      %p56 = por %p54, %p55
      %p57 = scmp.ne.s32.totalorder %s46, %s47
      %p58 = scmp.eq.s32.totalorder %s19, 0
      %p59 = por %p57, %p58
      %p60 = scmp.ne.s32.totalorder %s46, %s47
      %p61 = scmp.eq.s32.totalorder %s20, 1
      %p62 = por %p60, %p61
      %p64 = scmp.ne.s32.totalorder %s47, %s63
      %p65 = scmp.eq.s32.totalorder %s20, 0
      %p66 = por %p64, %p65
      %s67 = ssub.s32 0, %s23
      %s68 = smul.u32 %s22, %s67
      %s69 = sadd.s32 %s23, %s68
      %s70 = ssub.s32 0, %s32
      %s71 = smul.u32 %s36, %s70
      %s72 = sadd.s32 %s32, %s71
      %s73 = ssub.s32 %s69, %s72
      %p74 = scmp.eq.s32.totalorder %s73, 0
      %s76 = sadd.s32 %s75, 1
      %s77 = scalar_select %p74, %s75, %s76
      %p80 = pneg %p74
      %p81 = scmp.eq.s32.totalorder %s14, 1
      %p82 = por %p80, %p81
      %p83 = scmp.ne.s32.totalorder %s75, %s78
      %p84 = scmp.eq.s32.totalorder %s14, 0
      %p85 = por %p83, %p84
      %p86 = scmp.ne.s32.totalorder %s75, %s78
      %p87 = scmp.eq.s32.totalorder %s19, 1
      %p88 = por %p86, %p87
      %p89 = scmp.ne.s32.totalorder %s78, %s79
      %p90 = scmp.eq.s32.totalorder %s19, 0
      %p91 = por %p89, %p90
      %p92 = scmp.ne.s32.totalorder %s78, %s79
      %p93 = scmp.eq.s32.totalorder %s20, 1
      %p94 = por %p92, %p93
      %p96 = scmp.ne.s32.totalorder %s79, %s95
      %p97 = scmp.eq.s32.totalorder %s20, 0
      %p98 = por %p96, %p97
      %s99 = ssub.s32 %s21, %s40
      %p100 = scmp.eq.s32.totalorder %s99, 0
      %s102 = sadd.s32 %s101, 1
      %s103 = scalar_select %p100, %s101, %s102
      %p106 = pneg %p100
      %p107 = scmp.eq.s32.totalorder %s14, 1
      %p108 = por %p106, %p107
      %p109 = scmp.ne.s32.totalorder %s101, %s104
      %p110 = scmp.eq.s32.totalorder %s14, 0
      %p111 = por %p109, %p110
      %p112 = scmp.ne.s32.totalorder %s101, %s104
      %p113 = scmp.eq.s32.totalorder %s19, 1
      %p114 = por %p112, %p113
      %p115 = scmp.ne.s32.totalorder %s104, %s105
      %p116 = scmp.eq.s32.totalorder %s19, 0
      %p117 = por %p115, %p116
      %p118 = scmp.ne.s32.totalorder %s104, %s105
      %p119 = scmp.eq.s32.totalorder %s20, 1
      %p120 = por %p118, %p119
      %p122 = scmp.ne.s32.totalorder %s105, %s121
      %p123 = scmp.eq.s32.totalorder %s20, 0
      %p124 = por %p122, %p123
      %s125 = ssub.s32 %s23, %s32
      %p126 = scmp.eq.s32.totalorder %s125, 0
      %s128 = sadd.s32 %s127, 1
      %s129 = scalar_select %p126, %s127, %s128
      %p132 = pneg %p126
      %p133 = scmp.eq.s32.totalorder %s14, 1
      %p134 = por %p132, %p133
      %p135 = scmp.ne.s32.totalorder %s127, %s130
      %p136 = scmp.eq.s32.totalorder %s14, 0
      %p137 = por %p135, %p136
      %p138 = scmp.ne.s32.totalorder %s127, %s130
      %p139 = scmp.eq.s32.totalorder %s19, 1
      %p140 = por %p138, %p139
      %p141 = scmp.ne.s32.totalorder %s130, %s131
      %p142 = scmp.eq.s32.totalorder %s19, 0
      %p143 = por %p141, %p142
      %p144 = scmp.ne.s32.totalorder %s130, %s131
      %p145 = scmp.eq.s32.totalorder %s20, 1
      %p146 = por %p144, %p145
      %p148 = scmp.ne.s32.totalorder %s131, %s147
      %p149 = scmp.eq.s32.totalorder %s20, 0
      %p150 = por %p148, %p149
      %s151 = ssub.s32 %s21, %s40
      %p152 = scmp.eq.s32.totalorder %s151, 0
      %s154 = sadd.s32 %s153, 1
      %s155 = scalar_select %p152, %s153, %s154
      %p158 = pneg %p152
      %p159 = scmp.eq.s32.totalorder %s14, 1
      %p160 = por %p158, %p159
      %p161 = scmp.ne.s32.totalorder %s153, %s156
      %p162 = scmp.eq.s32.totalorder %s14, 0
      %p163 = por %p161, %p162
      %p164 = scmp.ne.s32.totalorder %s153, %s156
      %p165 = scmp.eq.s32.totalorder %s19, 1
      %p166 = por %p164, %p165
      %p167 = scmp.ne.s32.totalorder %s156, %s157
      %p168 = scmp.eq.s32.totalorder %s19, 0
      %p169 = por %p167, %p168
      %p170 = scmp.ne.s32.totalorder %s156, %s157
      %p171 = scmp.eq.s32.totalorder %s20, 1
      %p172 = por %p170, %p171
      %p174 = scmp.ne.s32.totalorder %s157, %s173
      %p175 = scmp.eq.s32.totalorder %s20, 0
      %p176 = por %p174, %p175
      %s177 = ssub.s32 %s21, %s40
      %p178 = scmp.eq.s32.totalorder %s177, 0
      %s180 = sadd.s32 %s179, 1
      %s181 = scalar_select %p178, %s179, %s180
      %p184 = pneg %p178
      %p185 = scmp.eq.s32.totalorder %s14, 1
      %p186 = por %p184, %p185
      %p187 = scmp.ne.s32.totalorder %s179, %s182
      %p188 = scmp.eq.s32.totalorder %s14, 0
      %p189 = por %p187, %p188
      %p190 = scmp.ne.s32.totalorder %s179, %s182
      %p191 = scmp.eq.s32.totalorder %s19, 1
      %p192 = por %p190, %p191
      %p193 = scmp.ne.s32.totalorder %s182, %s183
      %p194 = scmp.eq.s32.totalorder %s19, 0
      %p195 = por %p193, %p194
      %p196 = scmp.ne.s32.totalorder %s182, %s183
      %p197 = scmp.eq.s32.totalorder %s20, 1
      %p198 = por %p196, %p197
      %p200 = scmp.ne.s32.totalorder %s183, %s199
      %p201 = scmp.eq.s32.totalorder %s20, 0
      %p202 = por %p200, %p201
      %p203 = scmp.le.s32.totalorder 1, %s14
      %p204 = scmp.lt.s32.totalorder %s14, 3
      %p205 = pnand %p203, %p204
      %p206 = pneg %p205
      // Predicated region
      $region9: #{tpu_custom_call.1} parent=5 // pred_check
        _
      $region10: #{tpu_custom_call.1} parent=5 // pred_check_branch
        %208 = sbr.rel (%p205) target = $region12
      $region11: #{tpu_custom_call.1} parent=5 // pred_region
        %s209 = ssub.s32 %s14, 1
        // Predicated region
        $region13: #{tpu_custom_call.1} parent=11 // pred_check
          %p210 = pneg %p59
        $region14: #{tpu_custom_call.1} parent=11 // pred_check_branch
          %212 = sbr.rel (%p210) target = $region16
        $region15: #{tpu_custom_call.1} parent=11 // pred_region
          %p213 = scmp.lt.s32.totalorder %s24, 0
          %s214 = scalar_select %p213, %s24, 0
          %s215 = smul.addr %s214, 8
          %s216 = scalar_lea.vmem %s0, %s215
        $region16: #{tpu_custom_call.1} parent=11 // pred_fallthru
          _
        // Predicated region
        $region17: #{tpu_custom_call.1} parent=11 // pred_check
          %p217 = pneg %p117
        $region18: #{tpu_custom_call.1} parent=11 // pred_check_branch
          %219 = sbr.rel (%p217) target = $region20
        $region19: #{tpu_custom_call.1} parent=11 // pred_region
          %p220 = scmp.lt.s32.totalorder %s24, 0
          %s221 = scalar_select %p220, %s24, 0
          %s222 = smul.addr %s221, 8
          %s223 = scalar_lea.vmem %s2, %s222
        $region20: #{tpu_custom_call.1} parent=11 // pred_fallthru
          _
        // Predicated region
        $region21: #{tpu_custom_call.1} parent=11 // pred_check
          %p224 = pneg %p143
        $region22: #{tpu_custom_call.1} parent=11 // pred_check_branch
          %226 = sbr.rel (%p224) target = $region24
        $region23: #{tpu_custom_call.1} parent=11 // pred_region
          %p227 = scmp.lt.s32.totalorder %s26, 0
          %s228 = scalar_select %p227, %s26, 0
          %s229 = scalar_lea.vmem %s3, %s228
        $region24: #{tpu_custom_call.1} parent=11 // pred_fallthru
          _
      $region12: #{tpu_custom_call.1} parent=5 // pred_fallthru
        _
      %p230 = scmp.lt.s32.totalorder %s14, 2
      // Predicated region
      $region25: #{tpu_custom_call.1} parent=5 // pred_check
        %p231 = pneg %p230
      $region26: #{tpu_custom_call.1} parent=5 // pred_check_branch
        %233 = sbr.rel (%p231) target = $region28
      $region27: #{tpu_custom_call.1} parent=5 // pred_region
        // Predicated region
        $region29: #{tpu_custom_call.1} parent=27 // pred_check
          %p234 = pneg %p85
        $region30: #{tpu_custom_call.1} parent=27 // pred_check_branch
          %236 = sbr.rel (%p234) target = $region32
        $region31: #{tpu_custom_call.1} parent=27 // pred_region
          %s237 = ssub.s32 0, %s23
          %s238 = smul.u32 %s22, %s237
          %s239 = sadd.s32 %s23, %s238
          %p240 = scmp.lt.s32.totalorder %s239, 0
          %s241 = scalar_select %p240, %s239, 0
          %s242 = smul.addr %s241, 8
          %s243 = scalar_lea.vmem %s1, %s242
          %s244 = ssub.s32 0, %s23
          %s245 = smul.u32 %s22, %s244
          %s246 = sadd.s32 %s23, %s245
        $region32: #{tpu_custom_call.1} parent=27 // pred_fallthru
          _
      $region28: #{tpu_custom_call.1} parent=5 // pred_fallthru
        _
      %p247 = scmp.le.s32.totalorder 1, %s14
      %p248 = scmp.lt.s32.totalorder %s14, 3
      %p249 = pnand %p247, %p248
      %p250 = pneg %p249
      // Predicated region
      $region33: #{tpu_custom_call.1} parent=5 // pred_check
        _
      $region34: #{tpu_custom_call.1} parent=5 // pred_check_branch
        %252 = sbr.rel (%p249) target = $region36
      $region35: #{tpu_custom_call.1} parent=5 // pred_region
        %s253 = ssub.s32 %s14, 1
        %p254 = scmp.lt.s32.totalorder %s24, 0
        %s255 = scalar_select %p254, %s24, 0
        %s256 = smul.addr %s255, 8
        %s257 = scalar_lea.vmem %s0, %s256
        %p258 = pneg %p59
        %p259 = pneg %p56
        %s260 = ssub.s32 0, %s26
        %s261 = smul.u32 %s25, %s260
        %s262 = sadd.s32 %s26, %s261
        %p263 = scmp.lt.s32.totalorder %s262, 0
        %s264 = scalar_select %p263, %s262, 0
        %s265 = smul.addr %s264, 8
        %s266 = scalar_lea.vmem %s1, %s265
        %p267 = pneg %p91
        %p268 = pneg %p88
        %p269 = scmp.lt.s32.totalorder %s24, 0
        %s270 = scalar_select %p269, %s24, 0
        %s271 = smul.addr %s270, 8
        %s272 = scalar_lea.vmem %s2, %s271
        %p273 = pneg %p117
        %p274 = pneg %p114
        %p275 = scmp.lt.s32.totalorder %s26, 0
        %s276 = scalar_select %p275, %s26, 0
        %s277 = scalar_lea.vmem %s3, %s276
        %p278 = pneg %p143
        %p279 = pneg %p140
        %p280 = pneg %p169
        %p281 = pneg %p166
        %p282 = pneg %p195
        %p283 = pneg %p192
        %p284 = scmp.lt.s32.totalorder %s24, 0
        %s285 = scalar_select %p284, %s24, 0
        %s286 = smul.addr %s285, 8
        %s287 = scalar_lea.vmem %s0, %s286
        %s288 = ssub.s32 0, %s26
        %s289 = smul.u32 %s25, %s288
        %s290 = sadd.s32 %s26, %s289
        %p291 = scmp.lt.s32.totalorder %s290, 0
        %s292 = scalar_select %p291, %s290, 0
        %s293 = smul.addr %s292, 8
        %s294 = scalar_lea.vmem %s1, %s293
        %s295 = ssub.s32 0, %s26
        %s296 = smul.u32 %s25, %s295
        %s297 = sadd.s32 %s26, %s296
        %p298 = scmp.lt.s32.totalorder %s24, 0
        %s299 = scalar_select %p298, %s24, 0
        %s300 = smul.addr %s299, 8
        %s301 = scalar_lea.vmem %s2, %s300
        %p302 = scmp.lt.s32.totalorder %s26, 0
        %s303 = scalar_select %p302, %s26, 0
        %s304 = scalar_lea.vmem %s3, %s303
        %p305 = scmp.eq.s32.totalorder %s25, 0
        %p306 = scmp.eq.s32.totalorder %s26, 0
        %p307 = pnand %p305, %p306
        %p308 = pneg %p307
        // Predicated region
        $region37: #{tpu_custom_call.1} parent=35 // pred_check
          _
        $region38: #{tpu_custom_call.1} parent=35 // pred_check_branch
          %310 = sbr.rel (%p307) target = $region40
        $region39: #{tpu_custom_call.1} parent=35 // pred_region
          %vm311 = vcmask 7168
          %312 = vst.msk [vmem:[#allocation2] sm:$0xff] %vm311, -3e+38
          %313 = vst.msk [vmem:[#allocation3] sm:$0xff] %vm311, 0.0
          %314 = vst.msk [vmem:[#allocation4] sm:$0xff] %vm311, 0.0
          %315 = vst.msk [vmem:[#allocation5] sm:$0xff] %vm311, 0.0
        $region40: #{tpu_custom_call.1} parent=35 // pred_fallthru
          _
        // Predicated region
        $region41: #{tpu_custom_call.1} parent=35 // pred_check
          %p316 = pneg %p305
        $region42: #{tpu_custom_call.1} parent=35 // pred_check_branch
          %318 = sbr.rel (%p316) target = $region44
        $region43: #{tpu_custom_call.1} parent=35 // pred_region
          %v319 = vld [vmem:[%s301] sm:$0xff]
          %v320 = vld [vmem:[%s304] sm:$0x1]
          %321 = vset.pattern.permute.xlu0 0
          %322 = vperm.xlu0 %321, %v319
          %v323 = vpop.permute.xlu0 %322
          %v324 = vperm.slane %v320, 0
          %vm325 = vcmp.eq.s32.totalorder %v323, %v324
          %v326 = vlaneseq
          %v327 = vshrl.u32 %v326, 7
          %s328 = smul.u32 %s24, 8
          %v329 = vstv %s328
          %v330 = vadd.s32 %v327, %v329
          %v331 = vlaneseq
          %v332 = vand.u32 %v331, 127
          %s333 = smul.u32 %s26, 8
          %v334 = vstv %s333
          %v335 = vadd.s32 %v332, %v334
          %vm336 = vcmp.ne.s32.totalorder %v330, %v335
          %vm337 = vmand %vm325, %vm336
          %v338 = vld [vmem:[%s287] sm:$0xff]
          %v339 = vld [vmem:[%s294] sm:$0xff]
          %v340 = vld [vmem:[%s294 + $0x8] sm:$0xff]
          %v341 = vld [vmem:[%s294 + $0x10] sm:$0xff]
          %v342 = vld [vmem:[%s294 + $0x18] sm:$0xff]
          %vm343 = vcmask 261120
          %v345 = vsel %vm343, %v338, 0
          %347 = vmatpush.msra.mxu0 0.0
          %348 = vmatpush.msra.mxu0 0.0
          %349 = vmatpush.msra.mxu0 0.0
          %350 = vmatpush.msra.mxu0 0.0
          %351 = vmatpush.msra.mxu0 0.0
          %352 = vmatpush.msra.mxu0 0.0
          %353 = vmatpush.msra.mxu0 0.0
          %354 = vmatpush.msra.mxu0 0.0
          %355 = vmatpush.msra.mxu0 0.0
          %356 = vmatpush.msra.mxu0 0.0
          %357 = vmatpush.msra.mxu0 0.0
          %358 = vmatpush.msra.mxu0 0.0
          %359 = vmatpush.msra.mxu0 %v342
          %360 = vmatpush.msra.mxu0 %v341
          %361 = vmatpush.msra.mxu0 %v340
          %362 = vmatpush.msra.mxu0 %v339
          %363 = vmatmul.f32.gmra.mxu0 %v345
          %v364 = vpop.f32.mrf.mxu0
          %v365 = vadd.f32 0.0, %v364
          %366 = vdwg.mxu0
          %v367 = vmul.f32 %v365, 100.0
          %s368 = scalar_lea.vmem [#allocation6], %s333
          %vm369 = vcmask 64512
          %370 = vst.msk [vmem:[%s368] sm:$0xff] %vm369, %v367
          %v371 = vld [vmem:[#allocation2] sm:$0xff]
          %v372 = vsel %vm369, %v367, -inf
          %373 = vmax.xlane.f32.xlu0 %v372
          %v374 = vpop.xlane.xlu0 %373
          %v375 = vmax.f32 %v371, %v374
          %377 = vset.pattern.permute.xlu0 0
          %378 = vperm.xlu0 %377, %v375
          %v379 = vpop.permute.xlu0 %378
          %v381 = vsub.f32 %v367, %v379
          %v382 = vmul.f32 %v381, 1.442695
          %v383 = vpow.pop %v382
          %v384 = vsub.f32 %v371, %v375
          %v385 = vmul.f32 %v384, 1.442695
          %v386 = vpow.pop %v385
          %v387 = vld [vmem:[#allocation3] sm:$0xff]
          %v388 = vmul.f32 %v386, %v387
          %v389 = vsel %vm325, 0.0, %v383
          %v390 = vsel %vm369, %v389, 0.0
          %391 = vadd.xlane.f32.xlu0 %v390
          %v392 = vpop.xlane.xlu0 %391
          %v393 = vadd.f32 %v388, %v392
          %vm394 = vcmask 7168
          %395 = vst.msk [vmem:[#allocation3] sm:$0xff] %vm394, %v393
          %396 = vst.msk [vmem:[#allocation2] sm:$0xff] %vm394, %v375
          %v397 = vsel %vm337, 1, 0
          %v398 = vcvt.s32.f32 %v397
          %v399 = vsel %vm369, %v398, 0.0
          %400 = vadd.xlane.f32.xlu0 %v399
          %v401 = vpop.xlane.xlu0 %400
          %v402 = vrot.slane %v401, 4
          %v403 = vadd.f32 %v401, %v402
          %v404 = vrot.slane %v403, 2
          %v405 = vadd.f32 %v403, %v404
          %v406 = vrot.slane %v405, 1
          %v407 = vadd.f32 %v405, %v406
          %s408 = vtos %v407
          %p409 = scmp.gt.f32.partialorder %s408, 0.0
          %s410 = scalar_select %p409, 1, 0
          %s411 = scalar_lea.smem [#allocation7], %s26
          %412 = sst [smem:[%s411]] %s410
        $region44: #{tpu_custom_call.1} parent=35 // pred_fallthru
          _
        %p413 = scmp.eq.s32.totalorder %s25, 1
        %s414 = sld [smem:[#allocation7 + %s26]]
        %p415 = scmp.gt.s32.totalorder %s414, 0
        %p416 = pnand %p413, %p415
        %p417 = pneg %p416
        // Predicated region
        $region45: #{tpu_custom_call.1} parent=35 // pred_check
          _
        $region46: #{tpu_custom_call.1} parent=35 // pred_check_branch
          %419 = sbr.rel (%p416) target = $region48
        $region47: #{tpu_custom_call.1} parent=35 // pred_region
          %v420 = vld [vmem:[%s301] sm:$0xff]
          %v421 = vld [vmem:[%s304] sm:$0x1]
          %422 = vset.pattern.permute.xlu0 0
          %423 = vperm.xlu0 %422, %v420
          %v424 = vpop.permute.xlu0 %423
          %v425 = vperm.slane %v421, 0
          %vm426 = vcmp.eq.s32.totalorder %v424, %v425
          %v427 = vlaneseq
          %v428 = vshrl.u32 %v427, 7
          %s429 = smul.u32 %s24, 8
          %v430 = vstv %s429
          %v431 = vadd.s32 %v428, %v430
          %v432 = vlaneseq
          %v433 = vand.u32 %v432, 127
          %s434 = smul.u32 %s26, 8
          %v435 = vstv %s434
          %v436 = vadd.s32 %v433, %v435
          %vm437 = vcmp.ne.s32.totalorder %v431, %v436
          %vm438 = vmand %vm426, %vm437
          %s439 = scalar_lea.vmem [#allocation6], %s434
          %v440 = vld [vmem:[%s439] sm:$0xff]
          %v441 = vld [vmem:[#allocation2] sm:$0xff]
          %443 = vset.pattern.permute.xlu0 0
          %444 = vperm.xlu0 %443, %v441
          %v445 = vpop.permute.xlu0 %444
          %v447 = vsub.f32 %v440, %v445
          %v448 = vld [vmem:[#allocation3] sm:$0xff]
          %v449 = vmul.f32 %v447, 1.442695
          %v450 = vpow.pop %v449
          %452 = vset.pattern.permute.xlu0 0
          %453 = vperm.xlu0 %452, %v448
          %v454 = vpop.permute.xlu0 %453
          %v456 = vadd.f32 %v454, %v450
          %v457 = vlog2.pop %v456
          %v458 = vmul.f32 %v457, 0.6931472
          %v459 = vsub.f32 %v447, %v458
          %v460 = vld [vmem:[#allocation4] sm:$0xff]
          %v461 = vsel %vm438, 1, 0
          %v462 = vcvt.s32.f32 %v461
          %vm463 = vcmask 64512
          %v464 = vsel %vm463, %v462, 0.0
          %465 = vadd.xlane.f32.xlu0 %v464
          %v466 = vpop.xlane.xlu0 %465
          %v467 = vadd.f32 %v460, %v466
          %vm468 = vcmask 7168
          %469 = vst.msk [vmem:[#allocation4] sm:$0xff] %vm468, %v467
          %v470 = vld [vmem:[#allocation5] sm:$0xff]
          %v471 = vsel %vm438, %v459, 0.0
          %v472 = vsel %vm463, %v471, 0.0
          %473 = vadd.xlane.f32.xlu0 %v472
          %v474 = vpop.xlane.xlu0 %473
          %v475 = vadd.f32 %v470, %v474
          %476 = vst.msk [vmem:[#allocation5] sm:$0xff] %vm468, %v475
        $region48: #{tpu_custom_call.1} parent=35 // pred_fallthru
          _
        %p477 = pnand %p413, %p306
        %p478 = pneg %p477
        // Predicated region
        $region49: #{tpu_custom_call.1} parent=35 // pred_check
          _
        $region50: #{tpu_custom_call.1} parent=35 // pred_check_branch
          %480 = sbr.rel (%p477) target = $region52
        $region51: #{tpu_custom_call.1} parent=35 // pred_region
          %v481 = vld [vmem:[#allocation4] sm:$0xff]
          %vm482 = vcmp.gt.f32.partialorder %v481, 0.0
          %v483 = vld [vmem:[#allocation5] sm:$0xff]
          %v484 = vsel %vm482, %v481, 1.0
          %v485 = vrcp.pop %v484
          %v486 = vmul.f32 %v484, %v485
          %v487 = vsub.f32 1.0, %v486
          %v488 = vmul.f32 %v485, %v487
          %v489 = vadd.f32 %v485, %v488
          %vm490 = vweird.f32 %v484
          %vm491 = vweird.f32 %v485
          %vm492 = vmor %vm490, %vm491
          %v493 = vsel %vm492, %v485, %v489
          %v494 = vand.u32 2147483647, %v484
          %vm495 = vcmp.eq.f32.partialorder %v494, 8.507059e+37
          %v496 = vand.u32 %v484, 2147483648
          %v497 = vor.u32 1.1754944e-38, %v496
          %v498 = vsel %vm495, %v497, %v493
          %v499 = vmul.f32 %v483, %v498
          %v500 = vmul.f32 %v499, -0.01
          %v501 = vsel %vm482, %v500, 0.0
          %vm502 = vcmask 7168
          %v503 = vsel %vm502, %v501, 0.0
          %504 = vadd.xlane.f32.xlu0 %v503
          %v505 = vpop.xlane.xlu0 %504
          %v506 = vrot.slane %v505, 4
          %v507 = vadd.f32 %v505, %v506
          %v508 = vrot.slane %v507, 2
          %v509 = vadd.f32 %v507, %v508
          %v510 = vrot.slane %v509, 1
          %v511 = vadd.f32 %v509, %v510
          %s512 = vtos %v511
          %v513 = vsel %vm482, 1, 0
          %v514 = vcvt.s32.f32 %v513
          %v515 = vsel %vm502, %v514, 0.0
          %516 = vadd.xlane.f32.xlu0 %v515
          %v517 = vpop.xlane.xlu0 %516
          %v518 = vrot.slane %v517, 4
          %v519 = vadd.f32 %v517, %v518
          %v520 = vrot.slane %v519, 2
          %v521 = vadd.f32 %v519, %v520
          %v522 = vrot.slane %v521, 1
          %v523 = vadd.f32 %v521, %v522
          %s524 = vtos %v523
          %v525 = vstv %s512
          %526 = vst [vmem:[#allocation8] sm:$0xff] %v525
          %v527 = vstv %s524
          %528 = vst [vmem:[#allocation10] sm:$0xff] %v527
        $region52: #{tpu_custom_call.1} parent=35 // pred_fallthru
          _
        // Predicated region
        $region53: #{tpu_custom_call.1} parent=35 // pred_check
          %p529 = pneg %p166
        $region54: #{tpu_custom_call.1} parent=35 // pred_check_branch
          %531 = sbr.rel (%p529) target = $region56
        $region55: #{tpu_custom_call.1} parent=35 // pred_region
          %533 = vsyncadd [#allocation9], 0
          %s534 = smul.addr %s24, 8
          %s535 = scalar_lea.hbm %s4, %s534
          %s537 = sshll.u32 [#allocation8], 4
          %s538 = int_to_ptr.vmem [resolvable:$true] %s537
          %s539 = sshll.u32 %s535, 4
          %s540 = int_to_ptr.hbm [resolvable:$true] %s539
          %542 = dma.vmem_to_hbm [thread:$0]  %s538, 128, %s540, [#allocation9]
        $region56: #{tpu_custom_call.1} parent=35 // pred_fallthru
          _
        // Predicated region
        $region57: #{tpu_custom_call.1} parent=35 // pred_check
          %p543 = pneg %p192
        $region58: #{tpu_custom_call.1} parent=35 // pred_check_branch
          %545 = sbr.rel (%p543) target = $region60
        $region59: #{tpu_custom_call.1} parent=35 // pred_region
          %547 = vsyncadd [#allocation11], 0
          %s548 = smul.addr %s24, 8
          %s549 = scalar_lea.hbm %s5, %s548
          %s551 = sshll.u32 [#allocation10], 4
          %s552 = int_to_ptr.vmem [resolvable:$true] %s551
          %s553 = sshll.u32 %s549, 4
          %s554 = int_to_ptr.hbm [resolvable:$true] %s553
          %556 = dma.vmem_to_hbm [thread:$0]  %s552, 128, %s554, [#allocation11]
        $region60: #{tpu_custom_call.1} parent=35 // pred_fallthru
          _
        // Predicated region
        $region61: #{tpu_custom_call.1} parent=35 // pred_check
          %p557 = pneg %p166
        $region62: #{tpu_custom_call.1} parent=35 // pred_check_branch
          %559 = sbr.rel (%p557) target = $region64
        $region63: #{tpu_custom_call.1} parent=35 // pred_region
          %561 = dma.done [#allocation9], 128
        $region64: #{tpu_custom_call.1} parent=35 // pred_fallthru
          _
        // Predicated region
        $region65: #{tpu_custom_call.1} parent=35 // pred_check
          %p562 = pneg %p192
        $region66: #{tpu_custom_call.1} parent=35 // pred_check_branch
          %564 = sbr.rel (%p562) target = $region68
        $region67: #{tpu_custom_call.1} parent=35 // pred_region
          %566 = dma.done [#allocation11], 128
        $region68: #{tpu_custom_call.1} parent=35 // pred_fallthru
          _
      $region36: #{tpu_custom_call.1} parent=5 // pred_fallthru
        _
      %p567 = scmp.le.s32.totalorder 2, %s14
      // Predicated region
      $region69: #{tpu_custom_call.1} parent=5 // pred_check
        %p568 = pneg %p567
      $region70: #{tpu_custom_call.1} parent=5 // pred_check_branch
        %570 = sbr.rel (%p568) target = $region72
      $region71: #{tpu_custom_call.1} parent=5 // pred_region
        %s571 = ssub.s32 %s14, 2
      $region72: #{tpu_custom_call.1} parent=5 // pred_fallthru
        _
    $region6: #{tpu_custom_call.1} parent=1 // loop_footer
      %s18 = sadd.s32 1, %s14
    $region7: #{tpu_custom_call.1} parent=1 // loop_footer_branch
      %13 = sbr.rel target = $region3
    $region8: #{tpu_custom_call.1} parent=1 // loop_exit
      _
    %572 = vsyncpa [#allocation9], 1
    %s573 = scalar_lea.sflag [#allocation9], 1
    %574 = vsyncpa %s573, 1
    %575 = vsyncpa [#allocation11], 1

</llo_original>
